<compile_context>
chip_gen: v7x
topology: tpu7x:2x2x1
jax: 0.10.0
libtpu: 0.0.40
codegen_flags: <defaults>
</compile_context>

<pallas_src>
import functools

import jax
import jax.numpy as jnp
from jax.experimental import pallas as pl
from jax.experimental.pallas import tpu as pltpu


def mlp3_kernel(x_ref,
                w1_ref, b1_ref, w2_ref, b2_ref, w3_ref, b3_ref,
                o_ref):
    """Fused forward for one batch tile. Matmuls on the MXU (bf16 in, f32 acc);
    bias-add / ReLU on the VPU in f32. Dropout(p=0.0) is the identity."""
    x = x_ref[...]  # f32 [tile, n_in]

    # layer 1 + ReLU
    h = jnp.dot(x.astype(jnp.bfloat16), w1_ref[...],
                preferred_element_type=jnp.float32) + b1_ref[...]
    h = jnp.maximum(h, 0.0)

    # layer 2 + ReLU
    h = jnp.dot(h.astype(jnp.bfloat16), w2_ref[...],
                preferred_element_type=jnp.float32) + b2_ref[...]
    h = jnp.maximum(h, 0.0)

    # layer 3 (no activation)
    out = jnp.dot(h.astype(jnp.bfloat16), w3_ref[...],
                  preferred_element_type=jnp.float32) + b3_ref[...]
    o_ref[...] = out.astype(o_ref.dtype)


def _round_up(n, m):
    return ((n + m - 1) // m) * m


@functools.partial(jax.jit, static_argnames=("batch_tile",))
def net_ann_3_no_bn(x, params, *, batch_tile=512):
    """x: [B, n_in] f32. params: list of 3 tuples (W[in,out] f32, b[1,out] f32)."""
    B, n_in = x.shape
    n_out = params[-1][0].shape[1]

    # Weights -> bf16 (MXU operands); biases stay f32 (VPU bias-add).
    flat_params = []
    weight_specs = []
    for (w, b) in params:
        flat_params.append(w.astype(jnp.bfloat16))
        flat_params.append(b.astype(jnp.float32))
        # Grid-invariant full blocks (constant index_map).
        weight_specs.append(pl.BlockSpec(w.shape, lambda i: (0, 0)))
        weight_specs.append(pl.BlockSpec(b.shape, lambda i: (0, 0)))

    # Pick the batch tile: as large as requested, but keep >= 2 grid steps when the
    # (8-aligned) batch allows it so both v7x TensorCores get work.
    b8 = _round_up(B, 8)
    tile = min(batch_tile, max(8, _round_up(pl.cdiv(b8, 2), 8)))
    b_pad = _round_up(b8, tile)
    if b_pad != B:
        x = jnp.pad(x, ((0, b_pad - B), (0, 0)))
    grid = (b_pad // tile,)

    out = pl.pallas_call(
        mlp3_kernel,
        out_shape=jax.ShapeDtypeStruct((b_pad, n_out), jnp.float32),
        grid_spec=pltpu.PrefetchScalarGridSpec(
            num_scalar_prefetch=0,
            grid=grid,
            in_specs=[pl.BlockSpec((tile, n_in), lambda i: (i, 0))] + weight_specs,
            out_specs=pl.BlockSpec((tile, n_out), lambda i: (i, 0)),
        ),
        compiler_params=pltpu.CompilerParams(
            dimension_semantics=("parallel",),
            vmem_limit_bytes=32 * 1024 * 1024,  # lift v5e's 16 MiB scoped default
        ),
    )(x, *flat_params)

    return out[:B]


def init_params(key, n_in, n_out, neurons=128):
    """Deterministic init mimicking nn.Linear default (uniform in +/- 1/sqrt(fan_in))."""
    sizes = [(n_in, neurons), (neurons, neurons), (neurons, n_out)]
    params = []
    for (fan_in, fan_out) in sizes:
        key, kw, kb = jax.random.split(key, 3)
        bound = 1.0 / (fan_in ** 0.5)
        # Stored already transposed: [in, out]  (PyTorch stores [out, in]).
        w = jax.random.uniform(kw, (fan_in, fan_out), jnp.float32, -bound, bound)
        b = jax.random.uniform(kb, (1, fan_out), jnp.float32, -bound, bound)
        params.append((w, b))
    return params


def reference_forward(x, params):
    """Pure-JAX reference matching the kernel numerics (bf16 operands, f32 accumulate)."""
    h = x
    n = len(params)
    for i, (w, b) in enumerate(params):
        z = jnp.dot(h.astype(jnp.bfloat16), w.astype(jnp.bfloat16),
                    preferred_element_type=jnp.float32) + b
        h = jnp.maximum(z, 0.0) if i < n - 1 else z
    return h


if __name__ == "__main__":
    key = jax.random.PRNGKey(0)
    kx, kp = jax.random.split(key)

    # Small deterministic shapes consistent with the module; batch is deliberately not
    # a multiple of the tile to exercise the pad/cdiv path.
    batch, n_in, n_out, neurons = 200, 32, 16, 128
    x = jax.random.normal(kx, (batch, n_in), jnp.float32)
    params = init_params(kp, n_in, n_out, neurons)

    out = net_ann_3_no_bn(x, params)
    out = jax.block_until_ready(out)

    ref = reference_forward(x, params)
    assert out.shape == (batch, n_out)
    assert jnp.allclose(out, ref, atol=5e-3, rtol=5e-3), "mismatch vs reference"

    print("KERNEL_OK")
</pallas_src>

<mosaic_0001>
module attributes {stable_mosaic.version = 11 : i64} {
  func.func @mlp3_kernel(%arg0: i32, %arg1: memref<104x32xf32, #tpu.memory_space<vmem>>, %arg2: memref<32x128xbf16, #tpu.memory_space<vmem>>, %arg3: memref<1x128xf32, #tpu.memory_space<vmem>>, %arg4: memref<128x128xbf16, #tpu.memory_space<vmem>>, %arg5: memref<1x128xf32, #tpu.memory_space<vmem>>, %arg6: memref<128x16xbf16, #tpu.memory_space<vmem>>, %arg7: memref<1x16xf32, #tpu.memory_space<vmem>>, %arg8: memref<104x16xf32, #tpu.memory_space<vmem>>) attributes {dimension_semantics = [#tpu.dimension_semantics<parallel>], iteration_bounds = array<i64: 2>, scalar_prefetch = 0 : i64, scratch_operands = 0 : i64, tpu.core_type = #tpu.core_type<tc>, window_params = [{transform_indices = @transform_0, window_bounds = array<i64: 104, 32>}, {pipeline_mode = #tpu.pipeline_mode<synchronous>, transform_indices = @transform_1, window_bounds = array<i64: 32, 128>}, {pipeline_mode = #tpu.pipeline_mode<synchronous>, transform_indices = @transform_2, window_bounds = array<i64: 1, 128>}, {pipeline_mode = #tpu.pipeline_mode<synchronous>, transform_indices = @transform_3, window_bounds = array<i64: 128, 128>}, {pipeline_mode = #tpu.pipeline_mode<synchronous>, transform_indices = @transform_4, window_bounds = array<i64: 1, 128>}, {pipeline_mode = #tpu.pipeline_mode<synchronous>, transform_indices = @transform_5, window_bounds = array<i64: 128, 16>}, {pipeline_mode = #tpu.pipeline_mode<synchronous>, transform_indices = @transform_6, window_bounds = array<i64: 1, 16>}, {transform_indices = @transform_7, window_bounds = array<i64: 104, 16>}]} {
    %c0 = arith.constant 0 : index
    %c0_0 = arith.constant 0 : index
    %0 = vector.load %arg1[%c0, %c0_0] : memref<104x32xf32, #tpu.memory_space<vmem>>, vector<104x32xf32>
    %1 = arith.truncf %0 : vector<104x32xf32> to vector<104x32xbf16>
    %c0_1 = arith.constant 0 : index
    %c0_2 = arith.constant 0 : index
    %2 = vector.load %arg2[%c0_1, %c0_2] : memref<32x128xbf16, #tpu.memory_space<vmem>>, vector<32x128xbf16>
    %cst = arith.constant dense<0.000000e+00> : vector<104x128xf32>
    %3 = tpu.matmul %1, %2, %cst {dimension_numbers = #tpu.dot_dimension_numbers<[1], [0], [0], [1], [0, 0, 1, 1], [], []>} : vector<104x32xbf16>, vector<32x128xbf16>, vector<104x128xf32> -> vector<104x128xf32>
    %c0_3 = arith.constant 0 : index
    %c0_4 = arith.constant 0 : index
    %4 = vector.load %arg3[%c0_3, %c0_4] : memref<1x128xf32, #tpu.memory_space<vmem>>, vector<1x128xf32>
    %5 = vector.broadcast %4 : vector<1x128xf32> to vector<104x128xf32>
    %6 = arith.addf %3, %5 : vector<104x128xf32>
    %cst_5 = arith.constant 0.000000e+00 : f32
    %7 = vector.broadcast %cst_5 : f32 to vector<104x128xf32>
    %8 = arith.maximumf %6, %7 : vector<104x128xf32>
    %9 = arith.truncf %8 : vector<104x128xf32> to vector<104x128xbf16>
    %c0_6 = arith.constant 0 : index
    %c0_7 = arith.constant 0 : index
    %10 = vector.load %arg4[%c0_6, %c0_7] : memref<128x128xbf16, #tpu.memory_space<vmem>>, vector<128x128xbf16>
    %cst_8 = arith.constant dense<0.000000e+00> : vector<104x128xf32>
    %11 = tpu.matmul %9, %10, %cst_8 {dimension_numbers = #tpu.dot_dimension_numbers<[1], [0], [0], [1], [0, 0, 1, 1], [], []>} : vector<104x128xbf16>, vector<128x128xbf16>, vector<104x128xf32> -> vector<104x128xf32>
    %c0_9 = arith.constant 0 : index
    %c0_10 = arith.constant 0 : index
    %12 = vector.load %arg5[%c0_9, %c0_10] : memref<1x128xf32, #tpu.memory_space<vmem>>, vector<1x128xf32>
    %13 = vector.broadcast %12 : vector<1x128xf32> to vector<104x128xf32>
    %14 = arith.addf %11, %13 : vector<104x128xf32>
    %cst_11 = arith.constant 0.000000e+00 : f32
    %15 = vector.broadcast %cst_11 : f32 to vector<104x128xf32>
    %16 = arith.maximumf %14, %15 : vector<104x128xf32>
    %17 = arith.truncf %16 : vector<104x128xf32> to vector<104x128xbf16>
    %c0_12 = arith.constant 0 : index
    %c0_13 = arith.constant 0 : index
    %18 = vector.load %arg6[%c0_12, %c0_13] : memref<128x16xbf16, #tpu.memory_space<vmem>>, vector<128x16xbf16>
    %cst_14 = arith.constant dense<0.000000e+00> : vector<104x16xf32>
    %19 = tpu.matmul %17, %18, %cst_14 {dimension_numbers = #tpu.dot_dimension_numbers<[1], [0], [0], [1], [0, 0, 1, 1], [], []>} : vector<104x128xbf16>, vector<128x16xbf16>, vector<104x16xf32> -> vector<104x16xf32>
    %c0_15 = arith.constant 0 : index
    %c0_16 = arith.constant 0 : index
    %20 = vector.load %arg7[%c0_15, %c0_16] : memref<1x16xf32, #tpu.memory_space<vmem>>, vector<1x16xf32>
    %21 = vector.broadcast %20 : vector<1x16xf32> to vector<104x16xf32>
    %22 = arith.addf %19, %21 : vector<104x16xf32>
    %c0_17 = arith.constant 0 : index
    %c0_18 = arith.constant 0 : index
    %23 = vector.load %arg8[%c0_17, %c0_18] : memref<104x16xf32, #tpu.memory_space<vmem>>, vector<104x16xf32>
    tpu.vector_store %arg8[%c0_17, %c0_18], %22 {strides = array<i32>} : memref<104x16xf32, #tpu.memory_space<vmem>>, vector<104x16xf32>,
    return
  }
  func.func @transform_0(%arg0: i32) -> (i32, i32) {
    %c0_i32 = arith.constant 0 : i32
    %c0_i32_0 = arith.constant 0 : i32
    return %arg0, %c0_i32 : i32, i32
  }
  func.func @transform_1(%arg0: i32) -> (i32, i32) {
    %c0_i32 = arith.constant 0 : i32
    %c0_i32_0 = arith.constant 0 : i32
    %c0_i32_1 = arith.constant 0 : i32
    return %c0_i32, %c0_i32_0 : i32, i32
  }
  func.func @transform_2(%arg0: i32) -> (i32, i32) {
    %c0_i32 = arith.constant 0 : i32
    %c0_i32_0 = arith.constant 0 : i32
    %c0_i32_1 = arith.constant 0 : i32
    return %c0_i32, %c0_i32_0 : i32, i32
  }
  func.func @transform_3(%arg0: i32) -> (i32, i32) {
    %c0_i32 = arith.constant 0 : i32
    %c0_i32_0 = arith.constant 0 : i32
    %c0_i32_1 = arith.constant 0 : i32
    return %c0_i32, %c0_i32_0 : i32, i32
  }
  func.func @transform_4(%arg0: i32) -> (i32, i32) {
    %c0_i32 = arith.constant 0 : i32
    %c0_i32_0 = arith.constant 0 : i32
    %c0_i32_1 = arith.constant 0 : i32
    return %c0_i32, %c0_i32_0 : i32, i32
  }
  func.func @transform_5(%arg0: i32) -> (i32, i32) {
    %c0_i32 = arith.constant 0 : i32
    %c0_i32_0 = arith.constant 0 : i32
    %c0_i32_1 = arith.constant 0 : i32
    return %c0_i32, %c0_i32_0 : i32, i32
  }
  func.func @transform_6(%arg0: i32) -> (i32, i32) {
    %c0_i32 = arith.constant 0 : i32
    %c0_i32_0 = arith.constant 0 : i32
    %c0_i32_1 = arith.constant 0 : i32
    return %c0_i32, %c0_i32_0 : i32, i32
  }
  func.func @transform_7(%arg0: i32) -> (i32, i32) {
    %c0_i32 = arith.constant 0 : i32
    %c0_i32_0 = arith.constant 0 : i32
    return %arg0, %c0_i32 : i32, i32
  }
}

</mosaic_0001>

<llo_original>
// kernel: net_ann_3_no_bn.1
$region0: #{net_ann_3_no_bn.1}
  #allocation0 [shape = 'u32[]', space=smem, size = 0x4, offset = 0x4, fixed_abs, tag = 'smem constant byte address 0x4 - core index']
  #allocation1 [shape = 'u32[144,128]{1,0:T(1,128)}', space=vmem, size = 0x12000, scoped, tag = 'internal scratch']
  %s0 = inlined_call_operand.vmem [shape: f32[208,32], index: 0, kind: input, shape index: {}]
  %s1 = inlined_call_operand.vmem [shape: bf16[32,128], index: 1, kind: input, shape index: {}]
  %s2 = inlined_call_operand.vmem [shape: f32[1,128], index: 2, kind: input, shape index: {}]
  %s3 = inlined_call_operand.vmem [shape: bf16[128,128], index: 3, kind: input, shape index: {}]
  %s4 = inlined_call_operand.vmem [shape: f32[1,128], index: 4, kind: input, shape index: {}]
  %s5 = inlined_call_operand.vmem [shape: bf16[128,16], index: 5, kind: input, shape index: {}]
  %s6 = inlined_call_operand.vmem [shape: f32[1,16], index: 6, kind: input, shape index: {}]
  %s7 = inlined_call_operand.vmem [shape: f32[208,16], index: 7, kind: output, shape index: {}]
  %s8 = sld [smem:[#allocation0]]
  $region61: #{net_ann_3_no_bn.1} parent=0
    _
  %s10 = ssub.s32 1, %s8
  %s11 = scalar_select 0, %s10, %s8
  loop: start=0, step=1, limit=4
  $region2: #{net_ann_3_no_bn.1} parent=0 // loop_pre_header
    _
  $region3: #{net_ann_3_no_bn.1} parent=0 // loop_header
    %s13 = sphi 0, %s17
    %p14 = scmp.ge.s32.totalorder %s13, 4
    %s23 = sphi 0, %s25
    %s26 = sphi 0, %s23
    %s27 = sphi 0, %s26
    %s43 = sphi 0, %s27
    %s47 = sphi 0, %s47
    %s49 = sphi 0, %s47
    %s50 = sphi 0, %s49
    %s64 = sphi 0, %s50
    %s68 = sphi 0, %s68
    %s70 = sphi 0, %s68
    %s71 = sphi 0, %s70
    %s85 = sphi 0, %s71
    %s89 = sphi 0, %s89
    %s91 = sphi 0, %s89
    %s92 = sphi 0, %s91
    %s106 = sphi 0, %s92
    %s110 = sphi 0, %s110
    %s112 = sphi 0, %s110
    %s113 = sphi 0, %s112
    %s127 = sphi 0, %s113
    %s131 = sphi 0, %s131
    %s133 = sphi 0, %s131
    %s134 = sphi 0, %s133
    %s148 = sphi 0, %s134
    %s152 = sphi 0, %s152
    %s154 = sphi 0, %s152
    %s155 = sphi 0, %s154
    %s169 = sphi 0, %s155
    %s175 = sphi 0, %s177
    %s178 = sphi 0, %s175
    %s179 = sphi 0, %s178
    %s195 = sphi 0, %s179
  $region4: #{net_ann_3_no_bn.1} parent=0 // loop_header_branch
    %16 = sbr.rel (%p14) target = $region8
  $region5: #{net_ann_3_no_bn.1} parent=0 // loop_body
    %s18 = ssub.s32 %s13, 1
    %s19 = ssub.s32 %s13, 2
    %s20 = sadd.s32 %s13, 1
    %s21 = ssub.s32 %s13, %s20
    %p22 = scmp.eq.s32.totalorder %s21, 0
    %s24 = sadd.s32 %s23, 1
    %s25 = scalar_select %p22, %s23, %s24
    %p28 = pneg %p22
    %p29 = scmp.eq.s32.totalorder %s13, 1
    %p30 = por %p28, %p29
    %p31 = scmp.ne.s32.totalorder %s23, %s26
    %p32 = scmp.eq.s32.totalorder %s13, 0
    %p33 = por %p31, %p32
    %p34 = scmp.ne.s32.totalorder %s23, %s26
    %p35 = scmp.eq.s32.totalorder %s18, 1
    %p36 = por %p34, %p35
    %p37 = scmp.ne.s32.totalorder %s26, %s27
    %p38 = scmp.eq.s32.totalorder %s18, 0
    %p39 = por %p37, %p38
    %p40 = scmp.ne.s32.totalorder %s26, %s27
    %p41 = scmp.eq.s32.totalorder %s19, 1
    %p42 = por %p40, %p41
    %p44 = scmp.ne.s32.totalorder %s27, %s43
    %p45 = scmp.eq.s32.totalorder %s19, 0
    %p46 = por %p44, %p45
    %s48 = sadd.s32 %s47, 1
    %p51 = scmp.eq.s32.totalorder %s13, 1
    %p52 = scmp.ne.s32.totalorder %s47, %s49
    %p53 = scmp.eq.s32.totalorder %s13, 0
    %p54 = por %p52, %p53
    %p55 = scmp.ne.s32.totalorder %s47, %s49
    %p56 = scmp.eq.s32.totalorder %s18, 1
    %p57 = por %p55, %p56
    %p58 = scmp.ne.s32.totalorder %s49, %s50
    %p59 = scmp.eq.s32.totalorder %s18, 0
    %p60 = por %p58, %p59
    %p61 = scmp.ne.s32.totalorder %s49, %s50
    %p62 = scmp.eq.s32.totalorder %s19, 1
    %p63 = por %p61, %p62
    %p65 = scmp.ne.s32.totalorder %s50, %s64
    %p66 = scmp.eq.s32.totalorder %s19, 0
    %p67 = por %p65, %p66
    %s69 = sadd.s32 %s68, 1
    %p72 = scmp.eq.s32.totalorder %s13, 1
    %p73 = scmp.ne.s32.totalorder %s68, %s70
    %p74 = scmp.eq.s32.totalorder %s13, 0
    %p75 = por %p73, %p74
    %p76 = scmp.ne.s32.totalorder %s68, %s70
    %p77 = scmp.eq.s32.totalorder %s18, 1
    %p78 = por %p76, %p77
    %p79 = scmp.ne.s32.totalorder %s70, %s71
    %p80 = scmp.eq.s32.totalorder %s18, 0
    %p81 = por %p79, %p80
    %p82 = scmp.ne.s32.totalorder %s70, %s71
    %p83 = scmp.eq.s32.totalorder %s19, 1
    %p84 = por %p82, %p83
    %p86 = scmp.ne.s32.totalorder %s71, %s85
    %p87 = scmp.eq.s32.totalorder %s19, 0
    %p88 = por %p86, %p87
    %s90 = sadd.s32 %s89, 1
    %p93 = scmp.eq.s32.totalorder %s13, 1
    %p94 = scmp.ne.s32.totalorder %s89, %s91
    %p95 = scmp.eq.s32.totalorder %s13, 0
    %p96 = por %p94, %p95
    %p97 = scmp.ne.s32.totalorder %s89, %s91
    %p98 = scmp.eq.s32.totalorder %s18, 1
    %p99 = por %p97, %p98
    %p100 = scmp.ne.s32.totalorder %s91, %s92
    %p101 = scmp.eq.s32.totalorder %s18, 0
    %p102 = por %p100, %p101
    %p103 = scmp.ne.s32.totalorder %s91, %s92
    %p104 = scmp.eq.s32.totalorder %s19, 1
    %p105 = por %p103, %p104
    %p107 = scmp.ne.s32.totalorder %s92, %s106
    %p108 = scmp.eq.s32.totalorder %s19, 0
    %p109 = por %p107, %p108
    %s111 = sadd.s32 %s110, 1
    %p114 = scmp.eq.s32.totalorder %s13, 1
    %p115 = scmp.ne.s32.totalorder %s110, %s112
    %p116 = scmp.eq.s32.totalorder %s13, 0
    %p117 = por %p115, %p116
    %p118 = scmp.ne.s32.totalorder %s110, %s112
    %p119 = scmp.eq.s32.totalorder %s18, 1
    %p120 = por %p118, %p119
    %p121 = scmp.ne.s32.totalorder %s112, %s113
    %p122 = scmp.eq.s32.totalorder %s18, 0
    %p123 = por %p121, %p122
    %p124 = scmp.ne.s32.totalorder %s112, %s113
    %p125 = scmp.eq.s32.totalorder %s19, 1
    %p126 = por %p124, %p125
    %p128 = scmp.ne.s32.totalorder %s113, %s127
    %p129 = scmp.eq.s32.totalorder %s19, 0
    %p130 = por %p128, %p129
    %s132 = sadd.s32 %s131, 1
    %p135 = scmp.eq.s32.totalorder %s13, 1
    %p136 = scmp.ne.s32.totalorder %s131, %s133
    %p137 = scmp.eq.s32.totalorder %s13, 0
    %p138 = por %p136, %p137
    %p139 = scmp.ne.s32.totalorder %s131, %s133
    %p140 = scmp.eq.s32.totalorder %s18, 1
    %p141 = por %p139, %p140
    %p142 = scmp.ne.s32.totalorder %s133, %s134
    %p143 = scmp.eq.s32.totalorder %s18, 0
    %p144 = por %p142, %p143
    %p145 = scmp.ne.s32.totalorder %s133, %s134
    %p146 = scmp.eq.s32.totalorder %s19, 1
    %p147 = por %p145, %p146
    %p149 = scmp.ne.s32.totalorder %s134, %s148
    %p150 = scmp.eq.s32.totalorder %s19, 0
    %p151 = por %p149, %p150
    %s153 = sadd.s32 %s152, 1
    %p156 = scmp.eq.s32.totalorder %s13, 1
    %p157 = scmp.ne.s32.totalorder %s152, %s154
    %p158 = scmp.eq.s32.totalorder %s13, 0
    %p159 = por %p157, %p158
    %p160 = scmp.ne.s32.totalorder %s152, %s154
    %p161 = scmp.eq.s32.totalorder %s18, 1
    %p162 = por %p160, %p161
    %p163 = scmp.ne.s32.totalorder %s154, %s155
    %p164 = scmp.eq.s32.totalorder %s18, 0
    %p165 = por %p163, %p164
    %p166 = scmp.ne.s32.totalorder %s154, %s155
    %p167 = scmp.eq.s32.totalorder %s19, 1
    %p168 = por %p166, %p167
    %p170 = scmp.ne.s32.totalorder %s155, %s169
    %p171 = scmp.eq.s32.totalorder %s19, 0
    %p172 = por %p170, %p171
    %s173 = ssub.s32 %s13, %s20
    %p174 = scmp.eq.s32.totalorder %s173, 0
    %s176 = sadd.s32 %s175, 1
    %s177 = scalar_select %p174, %s175, %s176
    %p180 = pneg %p174
    %p181 = scmp.eq.s32.totalorder %s13, 1
    %p182 = por %p180, %p181
    %p183 = scmp.ne.s32.totalorder %s175, %s178
    %p184 = scmp.eq.s32.totalorder %s13, 0
    %p185 = por %p183, %p184
    %p186 = scmp.ne.s32.totalorder %s175, %s178
    %p187 = scmp.eq.s32.totalorder %s18, 1
    %p188 = por %p186, %p187
    %p189 = scmp.ne.s32.totalorder %s178, %s179
    %p190 = scmp.eq.s32.totalorder %s18, 0
    %p191 = por %p189, %p190
    %p192 = scmp.ne.s32.totalorder %s178, %s179
    %p193 = scmp.eq.s32.totalorder %s19, 1
    %p194 = por %p192, %p193
    %p196 = scmp.ne.s32.totalorder %s179, %s195
    %p197 = scmp.eq.s32.totalorder %s19, 0
    %p198 = por %p196, %p197
    %p199 = scmp.le.s32.totalorder 1, %s13
    %p200 = scmp.lt.s32.totalorder %s13, 3
    %p201 = pnand %p199, %p200
    %p202 = pneg %p201
    // Predicated region
    $region9: #{net_ann_3_no_bn.1} parent=5 // pred_check
      _
    $region10: #{net_ann_3_no_bn.1} parent=5 // pred_check_branch
      %204 = sbr.rel (%p201) target = $region12
    $region11: #{net_ann_3_no_bn.1} parent=5 // pred_region
      %s205 = ssub.s32 %s13, 1
      // Predicated region
      $region13: #{net_ann_3_no_bn.1} parent=11 // pred_check
        %p206 = pneg %p60
      $region14: #{net_ann_3_no_bn.1} parent=11 // pred_check_branch
        %208 = sbr.rel (%p206) target = $region16
      $region15: #{net_ann_3_no_bn.1} parent=11 // pred_region
        _
      $region16: #{net_ann_3_no_bn.1} parent=11 // pred_fallthru
        _
      // Predicated region
      $region17: #{net_ann_3_no_bn.1} parent=11 // pred_check
        %p209 = pneg %p81
      $region18: #{net_ann_3_no_bn.1} parent=11 // pred_check_branch
        %211 = sbr.rel (%p209) target = $region20
      $region19: #{net_ann_3_no_bn.1} parent=11 // pred_region
        _
      $region20: #{net_ann_3_no_bn.1} parent=11 // pred_fallthru
        _
      // Predicated region
      $region21: #{net_ann_3_no_bn.1} parent=11 // pred_check
        %p212 = pneg %p102
      $region22: #{net_ann_3_no_bn.1} parent=11 // pred_check_branch
        %214 = sbr.rel (%p212) target = $region24
      $region23: #{net_ann_3_no_bn.1} parent=11 // pred_region
        _
      $region24: #{net_ann_3_no_bn.1} parent=11 // pred_fallthru
        _
      // Predicated region
      $region25: #{net_ann_3_no_bn.1} parent=11 // pred_check
        %p215 = pneg %p123
      $region26: #{net_ann_3_no_bn.1} parent=11 // pred_check_branch
        %217 = sbr.rel (%p215) target = $region28
      $region27: #{net_ann_3_no_bn.1} parent=11 // pred_region
        _
      $region28: #{net_ann_3_no_bn.1} parent=11 // pred_fallthru
        _
      // Predicated region
      $region29: #{net_ann_3_no_bn.1} parent=11 // pred_check
        %p218 = pneg %p144
      $region30: #{net_ann_3_no_bn.1} parent=11 // pred_check_branch
        %220 = sbr.rel (%p218) target = $region32
      $region31: #{net_ann_3_no_bn.1} parent=11 // pred_region
        _
      $region32: #{net_ann_3_no_bn.1} parent=11 // pred_fallthru
        _
      // Predicated region
      $region33: #{net_ann_3_no_bn.1} parent=11 // pred_check
        %p221 = pneg %p165
      $region34: #{net_ann_3_no_bn.1} parent=11 // pred_check_branch
        %223 = sbr.rel (%p221) target = $region36
      $region35: #{net_ann_3_no_bn.1} parent=11 // pred_region
        _
      $region36: #{net_ann_3_no_bn.1} parent=11 // pred_fallthru
        _
    $region12: #{net_ann_3_no_bn.1} parent=5 // pred_fallthru
      _
    %p224 = scmp.lt.s32.totalorder %s13, 2
    // Predicated region
    $region37: #{net_ann_3_no_bn.1} parent=5 // pred_check
      %p225 = pneg %p224
    $region38: #{net_ann_3_no_bn.1} parent=5 // pred_check_branch
      %227 = sbr.rel (%p225) target = $region40
    $region39: #{net_ann_3_no_bn.1} parent=5 // pred_region
      // Predicated region
      $region41: #{net_ann_3_no_bn.1} parent=39 // pred_check
        %p228 = pneg %p33
      $region42: #{net_ann_3_no_bn.1} parent=39 // pred_check_branch
        %230 = sbr.rel (%p228) target = $region44
      $region43: #{net_ann_3_no_bn.1} parent=39 // pred_region
        %s231 = smul.u32 13, %s13
        %p232 = scmp.lt.s32.totalorder %s231, 25
        %s233 = scalar_select %p232, %s231, 25
        %s234 = smul.addr %s233, 8
        %s235 = scalar_lea.vmem %s0, %s234
        %s236 = smul.u32 13, %s13
      $region44: #{net_ann_3_no_bn.1} parent=39 // pred_fallthru
        _
    $region40: #{net_ann_3_no_bn.1} parent=5 // pred_fallthru
      _
    %p237 = scmp.le.s32.totalorder 1, %s13
    %p238 = scmp.lt.s32.totalorder %s13, 3
    %p239 = pnand %p237, %p238
    %p240 = pneg %p239
    // Predicated region
    $region45: #{net_ann_3_no_bn.1} parent=5 // pred_check
      _
    $region46: #{net_ann_3_no_bn.1} parent=5 // pred_check_branch
      %242 = sbr.rel (%p239) target = $region48
    $region47: #{net_ann_3_no_bn.1} parent=5 // pred_region
      %s243 = ssub.s32 %s13, 1
      %s244 = smul.u32 13, %s18
      %p245 = scmp.lt.s32.totalorder %s244, 25
      %s246 = scalar_select %p245, %s244, 25
      %s247 = smul.addr %s246, 8
      %s248 = scalar_lea.vmem %s0, %s247
      %p249 = pneg %p39
      %p250 = pneg %p36
      %p251 = pneg %p60
      %p252 = pneg %p57
      %p253 = pneg %p81
      %p254 = pneg %p78
      %p255 = pneg %p102
      %p256 = pneg %p99
      %p257 = pneg %p123
      %p258 = pneg %p120
      %p259 = pneg %p144
      %p260 = pneg %p141
      %p261 = pneg %p165
      %p262 = pneg %p162
      %p263 = pneg %p191
      %p264 = pneg %p188
      %s265 = smul.u32 13, %s18
      %p266 = scmp.lt.s32.totalorder %s265, 25
      %s267 = scalar_select %p266, %s265, 25
      %s268 = smul.addr %s267, 8
      %s269 = scalar_lea.vmem %s7, %s268
      %s270 = smul.u32 13, %s18
      %p271 = scmp.lt.s32.totalorder %s270, 25
      %s272 = scalar_select %p271, %s270, 25
      %s273 = smul.addr %s272, 8
      %s274 = scalar_lea.vmem %s0, %s273
      %s275 = smul.u32 13, %s18
      %s276 = smul.u32 13, %s18
      %p277 = scmp.lt.s32.totalorder %s276, 25
      %s278 = scalar_select %p277, %s276, 25
      %s279 = smul.addr %s278, 8
      %s280 = scalar_lea.vmem %s7, %s279
      %s281 = smul.u32 13, %s18
      %v283 = vld [vmem:[%s274] sm:$0xff]
      %v284 = vld [vmem:[%s274 + $0x8] sm:$0xff]
      %v285 = vld [vmem:[%s274 + $0x10] sm:$0xff]
      %v286 = vld [vmem:[%s274 + $0x18] sm:$0xff]
      %v287 = vld [vmem:[%s274 + $0x20] sm:$0xff]
      %v288 = vld [vmem:[%s274 + $0x28] sm:$0xff]
      %v289 = vld [vmem:[%s274 + $0x30] sm:$0xff]
      %v290 = vld [vmem:[%s274 + $0x38] sm:$0xff]
      %v291 = vld [vmem:[%s274 + $0x40] sm:$0xff]
      %v292 = vld [vmem:[%s274 + $0x48] sm:$0xff]
      %v293 = vld [vmem:[%s274 + $0x50] sm:$0xff]
      %v294 = vld [vmem:[%s274 + $0x58] sm:$0xff]
      %v295 = vld [vmem:[%s274 + $0x60] sm:$0xff]
      %v296 = vpack.c.bf16 %v284, %v283
      %v297 = vpack.c.bf16 %v286, %v285
      %v298 = vpack.c.bf16 %v288, %v287
      %v299 = vpack.c.bf16 %v290, %v289
      %v300 = vpack.c.bf16 %v292, %v291
      %v301 = vpack.c.bf16 %v294, %v293
      %v302 = vpack.c.bf16 %v295, %v295
      %v303 = vld [vmem:[%s1] sm:$0xf]
      %v304 = vld [vmem:[%s1 + $0x4] sm:$0xf]
      %v305 = vld [vmem:[%s1 + $0x8] sm:$0xf]
      %v306 = vld [vmem:[%s1 + $0xc] sm:$0xf]
      %v307 = vld [vmem:[%s2] sm:$0x1]
      %v309 = vlaneseq
      %v310 = vshrl.u32 %v309, 7
      %v311 = vsub.s32 0, %v310
      %v312 = vrot.slane %v307, %v311
      %v318 = vunpack.c.l.b16 %v303
      %v319 = vunpack.c.l.b16 %v304
      %v320 = vunpack.c.l.b16 %v305
      %v321 = vunpack.c.l.b16 %v306
      %v322 = vpack.c.b16 %v319, %v318
      %v323 = vpack.c.b16 %v321, %v320
      %vm326 = vcmask 261120
      %v328 = vsel %vm326, %v296, 0
      %v331 = vsel %vm326, %v297, 0
      %v334 = vsel %vm326, %v298, 0
      %v337 = vsel %vm326, %v299, 0
      %v340 = vsel %vm326, %v300, 0
      %v343 = vsel %vm326, %v301, 0
      %v346 = vsel %vm326, %v302, 0
      %348 = vmatprep.subr.bf16.mxu0 0
      %349 = vmatpush1.bf16.msra.mxu0 %v322
      %350 = vmatprep.subr.bf16.mxu0 0
      %351 = vmatpush1.bf16.msra.mxu0 %v323
      %352 = vmatprep.subr.bf16.mxu0 0
      %353 = vmatpush1.bf16.msra.mxu0 0
      %354 = vmatprep.subr.bf16.mxu0 0
      %355 = vmatpush1.bf16.msra.mxu0 0
      %356 = vmatprep.subr.bf16.mxu0 0
      %357 = vmatpush1.bf16.msra.mxu0 0
      %358 = vmatprep.subr.bf16.mxu0 0
      %359 = vmatpush1.bf16.msra.mxu0 0
      %360 = vmatprep.subr.bf16.mxu0 0
      %361 = vmatpush1.bf16.msra.mxu0 0
      %362 = vmatprep.subr.bf16.mxu0 0
      %363 = vmatpush1.bf16.msra.mxu0 0
      %364 = vmatprep.subr.bf16.mxu0 0
      %365 = vmatpush1.bf16.msra.mxu0 0
      %366 = vmatprep.subr.bf16.mxu0 0
      %367 = vmatpush1.bf16.msra.mxu0 0
      %368 = vmatprep.subr.bf16.mxu0 0
      %369 = vmatpush1.bf16.msra.mxu0 0
      %370 = vmatprep.subr.bf16.mxu0 0
      %371 = vmatpush1.bf16.msra.mxu0 0
      %372 = vmatprep.subr.bf16.mxu0 0
      %373 = vmatpush1.bf16.msra.mxu0 0
      %374 = vmatprep.subr.bf16.mxu0 0
      %375 = vmatpush1.bf16.msra.mxu0 0
      %376 = vmatprep.subr.bf16.mxu0 0
      %377 = vmatpush1.bf16.msra.mxu0 0
      %378 = vmatprep.subr.bf16.mxu0 0
      %379 = vmatpush1.bf16.msra.mxu0 0
      %380 = vmatprep.mubr.bf16.mxu0 0
      %381 = vmatmul.mubr.bf16.gmra.mrb[0].mxu0 %v328
      %v382 = vpop.f32.mrb[0].mxu0
      %v383 = vadd.f32 %v312, %v382
      %v384 = vpop.f32.mrb[0].mxu0
      %v385 = vpop.f32.mrb[0].mxu0
      %v386 = vadd.f32 %v312, %v385
      %v387 = vpop.f32.mrb[0].mxu0
      %388 = vmatprep.mubr.bf16.mxu0 0
      %389 = vmatmul.mubr.bf16.gmra.mrb[0].mxu0 %v331
      %v390 = vpop.f32.mrb[0].mxu0
      %v391 = vadd.f32 %v312, %v390
      %v392 = vpop.f32.mrb[0].mxu0
      %v393 = vpop.f32.mrb[0].mxu0
      %v394 = vadd.f32 %v312, %v393
      %v395 = vpop.f32.mrb[0].mxu0
      %396 = vmatprep.mubr.bf16.mxu0 0
      %397 = vmatmul.mubr.bf16.gmra.mrb[0].mxu0 %v334
      %v398 = vpop.f32.mrb[0].mxu0
      %v399 = vadd.f32 %v312, %v398
      %v400 = vpop.f32.mrb[0].mxu0
      %v401 = vpop.f32.mrb[0].mxu0
      %v402 = vadd.f32 %v312, %v401
      %v403 = vpop.f32.mrb[0].mxu0
      %404 = vmatprep.mubr.bf16.mxu0 0
      %405 = vmatmul.mubr.bf16.gmra.mrb[0].mxu0 %v337
      %v406 = vpop.f32.mrb[0].mxu0
      %v407 = vadd.f32 %v312, %v406
      %v408 = vpop.f32.mrb[0].mxu0
      %v409 = vpop.f32.mrb[0].mxu0
      %v410 = vadd.f32 %v312, %v409
      %v411 = vpop.f32.mrb[0].mxu0
      %412 = vmatprep.mubr.bf16.mxu0 0
      %413 = vmatmul.mubr.bf16.gmra.mrb[0].mxu0 %v340
      %v414 = vpop.f32.mrb[0].mxu0
      %v415 = vadd.f32 %v312, %v414
      %v416 = vpop.f32.mrb[0].mxu0
      %v417 = vpop.f32.mrb[0].mxu0
      %v418 = vadd.f32 %v312, %v417
      %v419 = vpop.f32.mrb[0].mxu0
      %420 = vmatprep.mubr.bf16.mxu0 0
      %421 = vmatmul.mubr.bf16.gmra.mrb[0].mxu0 %v343
      %v422 = vpop.f32.mrb[0].mxu0
      %v423 = vadd.f32 %v312, %v422
      %v424 = vpop.f32.mrb[0].mxu0
      %v425 = vpop.f32.mrb[0].mxu0
      %v426 = vadd.f32 %v312, %v425
      %v427 = vpop.f32.mrb[0].mxu0
      %428 = vmatprep.mubr.bf16.mxu0 0
      %429 = vmatmul.mubr.bf16.gmra.mrb[0].mxu0 %v346
      %v430 = vpop.f32.mrb[0].mxu0
      %v431 = vadd.f32 %v312, %v430
      %v432 = vpop.f32.mrb[0].mxu0
      %v433 = vpop.f32.mrb[0].mxu0
      %v434 = vpop.f32.mrb[0].mxu0
      %435 = vdwg.mxu0
      %v436 = vmax.f32 %v383, 0.0
      %v437 = vmax.f32 %v386, 0.0
      %v438 = vmax.f32 %v391, 0.0
      %v439 = vmax.f32 %v394, 0.0
      %v440 = vmax.f32 %v399, 0.0
      %v441 = vmax.f32 %v402, 0.0
      %v442 = vmax.f32 %v407, 0.0
      %v443 = vmax.f32 %v410, 0.0
      %v444 = vmax.f32 %v415, 0.0
      %v445 = vmax.f32 %v418, 0.0
      %v446 = vmax.f32 %v423, 0.0
      %v447 = vmax.f32 %v426, 0.0
      %v448 = vmax.f32 %v431, 0.0
      %v449 = vpack.c.bf16 %v437, %v436
      %v450 = vpack.c.bf16 %v439, %v438
      %v451 = vpack.c.bf16 %v441, %v440
      %v452 = vpack.c.bf16 %v443, %v442
      %v453 = vpack.c.bf16 %v445, %v444
      %v454 = vpack.c.bf16 %v447, %v446
      %v455 = vpack.c.bf16 %v448, %v448
      %v456 = vld [vmem:[%s3] sm:$0xf]
      %v457 = vld [vmem:[%s3 + $0x4] sm:$0xf]
      %v458 = vld [vmem:[%s3 + $0x8] sm:$0xf]
      %v459 = vld [vmem:[%s3 + $0xc] sm:$0xf]
      %v460 = vld [vmem:[%s3 + $0x10] sm:$0xf]
      %v461 = vld [vmem:[%s3 + $0x14] sm:$0xf]
      %v462 = vld [vmem:[%s3 + $0x18] sm:$0xf]
      %v463 = vld [vmem:[%s3 + $0x1c] sm:$0xf]
      %v464 = vld [vmem:[%s3 + $0x20] sm:$0xf]
      %v465 = vld [vmem:[%s3 + $0x24] sm:$0xf]
      %v466 = vld [vmem:[%s3 + $0x28] sm:$0xf]
      %v467 = vld [vmem:[%s3 + $0x2c] sm:$0xf]
      %v468 = vld [vmem:[%s3 + $0x30] sm:$0xf]
      %v469 = vld [vmem:[%s3 + $0x34] sm:$0xf]
      %v470 = vld [vmem:[%s3 + $0x38] sm:$0xf]
      %v471 = vld [vmem:[%s3 + $0x3c] sm:$0xf]
      %v472 = vld [vmem:[%s4] sm:$0x1]
      %v474 = vlaneseq
      %v475 = vshrl.u32 %v474, 7
      %v476 = vsub.s32 0, %v475
      %v477 = vrot.slane %v472, %v476
      %v495 = vunpack.c.l.b16 %v456
      %v496 = vunpack.c.l.b16 %v457
      %v497 = vunpack.c.l.b16 %v458
      %v498 = vunpack.c.l.b16 %v459
      %v499 = vunpack.c.l.b16 %v460
      %v500 = vunpack.c.l.b16 %v461
      %v501 = vunpack.c.l.b16 %v462
      %v502 = vunpack.c.l.b16 %v463
      %v503 = vunpack.c.l.b16 %v464
      %v504 = vunpack.c.l.b16 %v465
      %v505 = vunpack.c.l.b16 %v466
      %v506 = vunpack.c.l.b16 %v467
      %v507 = vunpack.c.l.b16 %v468
      %v508 = vunpack.c.l.b16 %v469
      %v509 = vunpack.c.l.b16 %v470
      %v510 = vunpack.c.l.b16 %v471
      %v511 = vpack.c.b16 %v496, %v495
      %v512 = vpack.c.b16 %v498, %v497
      %v513 = vpack.c.b16 %v500, %v499
      %v514 = vpack.c.b16 %v502, %v501
      %v515 = vpack.c.b16 %v504, %v503
      %v516 = vpack.c.b16 %v506, %v505
      %v517 = vpack.c.b16 %v508, %v507
      %v518 = vpack.c.b16 %v510, %v509
      %527 = vmatprep.subr.bf16.mxu0 0
      %528 = vmatpush1.bf16.msra.mxu0 %v511
      %529 = vmatprep.subr.bf16.mxu0 0
      %530 = vmatpush1.bf16.msra.mxu0 %v512
      %531 = vmatprep.subr.bf16.mxu0 0
      %532 = vmatpush1.bf16.msra.mxu0 %v513
      %533 = vmatprep.subr.bf16.mxu0 0
      %534 = vmatpush1.bf16.msra.mxu0 %v514
      %535 = vmatprep.subr.bf16.mxu0 0
      %536 = vmatpush1.bf16.msra.mxu0 %v515
      %537 = vmatprep.subr.bf16.mxu0 0
      %538 = vmatpush1.bf16.msra.mxu0 %v516
      %539 = vmatprep.subr.bf16.mxu0 0
      %540 = vmatpush1.bf16.msra.mxu0 %v517
      %541 = vmatprep.subr.bf16.mxu0 0
      %542 = vmatpush1.bf16.msra.mxu0 %v518
      %543 = vmatprep.subr.bf16.mxu0 0
      %544 = vmatpush1.bf16.msra.mxu0 0
      %545 = vmatprep.subr.bf16.mxu0 0
      %546 = vmatpush1.bf16.msra.mxu0 0
      %547 = vmatprep.subr.bf16.mxu0 0
      %548 = vmatpush1.bf16.msra.mxu0 0
      %549 = vmatprep.subr.bf16.mxu0 0
      %550 = vmatpush1.bf16.msra.mxu0 0
      %551 = vmatprep.subr.bf16.mxu0 0
      %552 = vmatpush1.bf16.msra.mxu0 0
      %553 = vmatprep.subr.bf16.mxu0 0
      %554 = vmatpush1.bf16.msra.mxu0 0
      %555 = vmatprep.subr.bf16.mxu0 0
      %556 = vmatpush1.bf16.msra.mxu0 0
      %557 = vmatprep.subr.bf16.mxu0 0
      %558 = vmatpush1.bf16.msra.mxu0 0
      %559 = vmatprep.mubr.bf16.mxu0 0
      %560 = vmatmul.mubr.bf16.gmra.mrb[0].mxu0 %v449
      %v561 = vpop.f32.mrb[0].mxu0
      %v562 = vadd.f32 %v477, %v561
      %v563 = vpop.f32.mrb[0].mxu0
      %v564 = vpop.f32.mrb[0].mxu0
      %v565 = vadd.f32 %v477, %v564
      %v566 = vpop.f32.mrb[0].mxu0
      %567 = vmatprep.mubr.bf16.mxu0 0
      %568 = vmatmul.mubr.bf16.gmra.mrb[0].mxu0 %v450
      %v569 = vpop.f32.mrb[0].mxu0
      %v570 = vadd.f32 %v477, %v569
      %v571 = vpop.f32.mrb[0].mxu0
      %v572 = vpop.f32.mrb[0].mxu0
      %v573 = vadd.f32 %v477, %v572
      %v574 = vpop.f32.mrb[0].mxu0
      %575 = vmatprep.mubr.bf16.mxu0 0
      %576 = vmatmul.mubr.bf16.gmra.mrb[0].mxu0 %v451
      %v577 = vpop.f32.mrb[0].mxu0
      %v578 = vadd.f32 %v477, %v577
      %v579 = vpop.f32.mrb[0].mxu0
      %v580 = vpop.f32.mrb[0].mxu0
      %v581 = vadd.f32 %v477, %v580
      %v582 = vpop.f32.mrb[0].mxu0
      %583 = vmatprep.mubr.bf16.mxu0 0
      %584 = vmatmul.mubr.bf16.gmra.mrb[0].mxu0 %v452
      %v585 = vpop.f32.mrb[0].mxu0
      %v586 = vadd.f32 %v477, %v585
      %v587 = vpop.f32.mrb[0].mxu0
      %v588 = vpop.f32.mrb[0].mxu0
      %v589 = vadd.f32 %v477, %v588
      %v590 = vpop.f32.mrb[0].mxu0
      %591 = vmatprep.mubr.bf16.mxu0 0
      %592 = vmatmul.mubr.bf16.gmra.mrb[0].mxu0 %v453
      %v593 = vpop.f32.mrb[0].mxu0
      %v594 = vadd.f32 %v477, %v593
      %v595 = vpop.f32.mrb[0].mxu0
      %v596 = vpop.f32.mrb[0].mxu0
      %v597 = vadd.f32 %v477, %v596
      %v598 = vpop.f32.mrb[0].mxu0
      %599 = vmatprep.mubr.bf16.mxu0 0
      %600 = vmatmul.mubr.bf16.gmra.mrb[0].mxu0 %v454
      %v601 = vpop.f32.mrb[0].mxu0
      %v602 = vadd.f32 %v477, %v601
      %v603 = vpop.f32.mrb[0].mxu0
      %v604 = vpop.f32.mrb[0].mxu0
      %v605 = vadd.f32 %v477, %v604
      %v606 = vpop.f32.mrb[0].mxu0
      %607 = vmatprep.mubr.bf16.mxu0 0
      %608 = vmatmul.mubr.bf16.gmra.mrb[0].mxu0 %v455
      %v609 = vpop.f32.mrb[0].mxu0
      %v610 = vadd.f32 %v477, %v609
      %v611 = vpop.f32.mrb[0].mxu0
      %v612 = vpop.f32.mrb[0].mxu0
      %v613 = vpop.f32.mrb[0].mxu0
      %614 = vdwg.mxu0
      %v615 = vmax.f32 %v562, 0.0
      %v616 = vmax.f32 %v565, 0.0
      %v617 = vmax.f32 %v570, 0.0
      %v618 = vmax.f32 %v573, 0.0
      %v619 = vmax.f32 %v578, 0.0
      %v620 = vmax.f32 %v581, 0.0
      %v621 = vmax.f32 %v586, 0.0
      %v622 = vmax.f32 %v589, 0.0
      %v623 = vmax.f32 %v594, 0.0
      %v624 = vmax.f32 %v597, 0.0
      %v625 = vmax.f32 %v602, 0.0
      %v626 = vmax.f32 %v605, 0.0
      %v627 = vmax.f32 %v610, 0.0
      %v628 = vpack.c.bf16 %v616, %v615
      %v629 = vpack.c.bf16 %v618, %v617
      %v630 = vpack.c.bf16 %v620, %v619
      %v631 = vpack.c.bf16 %v622, %v621
      %v632 = vpack.c.bf16 %v624, %v623
      %v633 = vpack.c.bf16 %v626, %v625
      %v634 = vpack.c.bf16 %v627, %v627
      %v635 = vld [vmem:[%s5] sm:$0xf]
      %v636 = vld [vmem:[%s5 + $0x4] sm:$0xf]
      %v637 = vld [vmem:[%s5 + $0x8] sm:$0xf]
      %v638 = vld [vmem:[%s5 + $0xc] sm:$0xf]
      %v639 = vld [vmem:[%s5 + $0x10] sm:$0xf]
      %v640 = vld [vmem:[%s5 + $0x14] sm:$0xf]
      %v641 = vld [vmem:[%s5 + $0x18] sm:$0xf]
      %v642 = vld [vmem:[%s5 + $0x1c] sm:$0xf]
      %v643 = vld [vmem:[%s5 + $0x20] sm:$0xf]
      %v644 = vld [vmem:[%s5 + $0x24] sm:$0xf]
      %v645 = vld [vmem:[%s5 + $0x28] sm:$0xf]
      %v646 = vld [vmem:[%s5 + $0x2c] sm:$0xf]
      %v647 = vld [vmem:[%s5 + $0x30] sm:$0xf]
      %v648 = vld [vmem:[%s5 + $0x34] sm:$0xf]
      %v649 = vld [vmem:[%s5 + $0x38] sm:$0xf]
      %v650 = vld [vmem:[%s5 + $0x3c] sm:$0xf]
      %v651 = vld [vmem:[%s6] sm:$0x1]
      %v653 = vlaneseq
      %v654 = vshrl.u32 %v653, 7
      %v655 = vsub.s32 0, %v654
      %v656 = vrot.slane %v651, %v655
      %v674 = vunpack.c.l.b16 %v635
      %v675 = vunpack.c.l.b16 %v636
      %v676 = vunpack.c.l.b16 %v637
      %v677 = vunpack.c.l.b16 %v638
      %v678 = vunpack.c.l.b16 %v639
      %v679 = vunpack.c.l.b16 %v640
      %v680 = vunpack.c.l.b16 %v641
      %v681 = vunpack.c.l.b16 %v642
      %v682 = vunpack.c.l.b16 %v643
      %v683 = vunpack.c.l.b16 %v644
      %v684 = vunpack.c.l.b16 %v645
      %v685 = vunpack.c.l.b16 %v646
      %v686 = vunpack.c.l.b16 %v647
      %v687 = vunpack.c.l.b16 %v648
      %v688 = vunpack.c.l.b16 %v649
      %v689 = vunpack.c.l.b16 %v650
      %v690 = vpack.c.b16 %v675, %v674
      %v691 = vpack.c.b16 %v677, %v676
      %v692 = vpack.c.b16 %v679, %v678
      %v693 = vpack.c.b16 %v681, %v680
      %v694 = vpack.c.b16 %v683, %v682
      %v695 = vpack.c.b16 %v685, %v684
      %v696 = vpack.c.b16 %v687, %v686
      %v697 = vpack.c.b16 %v689, %v688
      %706 = vmatprep.subr.bf16.mxu0 0
      %707 = vmatpush1.bf16.msra.mxu0 %v690
      %708 = vmatprep.subr.bf16.mxu0 0
      %709 = vmatpush1.bf16.msra.mxu0 %v691
      %710 = vmatprep.subr.bf16.mxu0 0
      %711 = vmatpush1.bf16.msra.mxu0 %v692
      %712 = vmatprep.subr.bf16.mxu0 0
      %713 = vmatpush1.bf16.msra.mxu0 %v693
      %714 = vmatprep.subr.bf16.mxu0 0
      %715 = vmatpush1.bf16.msra.mxu0 %v694
      %716 = vmatprep.subr.bf16.mxu0 0
      %717 = vmatpush1.bf16.msra.mxu0 %v695
      %718 = vmatprep.subr.bf16.mxu0 0
      %719 = vmatpush1.bf16.msra.mxu0 %v696
      %720 = vmatprep.subr.bf16.mxu0 0
      %721 = vmatpush1.bf16.msra.mxu0 %v697
      %722 = vmatprep.subr.bf16.mxu0 0
      %723 = vmatpush1.bf16.msra.mxu0 0
      %724 = vmatprep.subr.bf16.mxu0 0
      %725 = vmatpush1.bf16.msra.mxu0 0
      %726 = vmatprep.subr.bf16.mxu0 0
      %727 = vmatpush1.bf16.msra.mxu0 0
      %728 = vmatprep.subr.bf16.mxu0 0
      %729 = vmatpush1.bf16.msra.mxu0 0
      %730 = vmatprep.subr.bf16.mxu0 0
      %731 = vmatpush1.bf16.msra.mxu0 0
      %732 = vmatprep.subr.bf16.mxu0 0
      %733 = vmatpush1.bf16.msra.mxu0 0
      %734 = vmatprep.subr.bf16.mxu0 0
      %735 = vmatpush1.bf16.msra.mxu0 0
      %736 = vmatprep.subr.bf16.mxu0 0
      %737 = vmatpush1.bf16.msra.mxu0 0
      %738 = vmatprep.mubr.bf16.mxu0 0
      %739 = vmatmul.mubr.bf16.gmra.mrb[0].mxu0 %v628
      %v740 = vpop.f32.mrb[0].mxu0
      %v741 = vadd.f32 %v656, %v740
      %v742 = vpop.f32.mrb[0].mxu0
      %v743 = vpop.f32.mrb[0].mxu0
      %v744 = vadd.f32 %v656, %v743
      %v745 = vpop.f32.mrb[0].mxu0
      %746 = vmatprep.mubr.bf16.mxu0 0
      %747 = vmatmul.mubr.bf16.gmra.mrb[0].mxu0 %v629
      %v748 = vpop.f32.mrb[0].mxu0
      %v749 = vadd.f32 %v656, %v748
      %v750 = vpop.f32.mrb[0].mxu0
      %v751 = vpop.f32.mrb[0].mxu0
      %v752 = vadd.f32 %v656, %v751
      %v753 = vpop.f32.mrb[0].mxu0
      %754 = vmatprep.mubr.bf16.mxu0 0
      %755 = vmatmul.mubr.bf16.gmra.mrb[0].mxu0 %v630
      %v756 = vpop.f32.mrb[0].mxu0
      %v757 = vadd.f32 %v656, %v756
      %v758 = vpop.f32.mrb[0].mxu0
      %v759 = vpop.f32.mrb[0].mxu0
      %v760 = vadd.f32 %v656, %v759
      %v761 = vpop.f32.mrb[0].mxu0
      %762 = vmatprep.mubr.bf16.mxu0 0
      %763 = vmatmul.mubr.bf16.gmra.mrb[0].mxu0 %v631
      %v764 = vpop.f32.mrb[0].mxu0
      %v765 = vadd.f32 %v656, %v764
      %v766 = vpop.f32.mrb[0].mxu0
      %v767 = vpop.f32.mrb[0].mxu0
      %v768 = vadd.f32 %v656, %v767
      %v769 = vpop.f32.mrb[0].mxu0
      %770 = vmatprep.mubr.bf16.mxu0 0
      %771 = vmatmul.mubr.bf16.gmra.mrb[0].mxu0 %v632
      %v772 = vpop.f32.mrb[0].mxu0
      %v773 = vadd.f32 %v656, %v772
      %v774 = vpop.f32.mrb[0].mxu0
      %v775 = vpop.f32.mrb[0].mxu0
      %v776 = vadd.f32 %v656, %v775
      %v777 = vpop.f32.mrb[0].mxu0
      %778 = vmatprep.mubr.bf16.mxu0 0
      %779 = vmatmul.mubr.bf16.gmra.mrb[0].mxu0 %v633
      %v780 = vpop.f32.mrb[0].mxu0
      %v781 = vadd.f32 %v656, %v780
      %v782 = vpop.f32.mrb[0].mxu0
      %v783 = vpop.f32.mrb[0].mxu0
      %v784 = vadd.f32 %v656, %v783
      %v785 = vpop.f32.mrb[0].mxu0
      %786 = vmatprep.mubr.bf16.mxu0 0
      %787 = vmatmul.mubr.bf16.gmra.mrb[0].mxu0 %v634
      %v788 = vpop.f32.mrb[0].mxu0
      %v789 = vadd.f32 %v656, %v788
      %v790 = vpop.f32.mrb[0].mxu0
      %v791 = vpop.f32.mrb[0].mxu0
      %v792 = vpop.f32.mrb[0].mxu0
      %793 = vdwg.mxu0
      %vm794 = vcmask 130048
      %795 = vst.msk [vmem:[%s280] sm:$0xff] %vm794, %v741
      %796 = vst.msk [vmem:[%s280 + $0x8] sm:$0xff] %vm794, %v744
      %797 = vst.msk [vmem:[%s280 + $0x10] sm:$0xff] %vm794, %v749
      %798 = vst.msk [vmem:[%s280 + $0x18] sm:$0xff] %vm794, %v752
      %799 = vst.msk [vmem:[%s280 + $0x20] sm:$0xff] %vm794, %v757
      %800 = vst.msk [vmem:[%s280 + $0x28] sm:$0xff] %vm794, %v760
      %801 = vst.msk [vmem:[%s280 + $0x30] sm:$0xff] %vm794, %v765
      %802 = vst.msk [vmem:[%s280 + $0x38] sm:$0xff] %vm794, %v768
      %803 = vst.msk [vmem:[%s280 + $0x40] sm:$0xff] %vm794, %v773
      %804 = vst.msk [vmem:[%s280 + $0x48] sm:$0xff] %vm794, %v776
      %805 = vst.msk [vmem:[%s280 + $0x50] sm:$0xff] %vm794, %v781
      %806 = vst.msk [vmem:[%s280 + $0x58] sm:$0xff] %vm794, %v784
      %807 = vst.msk [vmem:[%s280 + $0x60] sm:$0xff] %vm794, %v789
      %s808 = smul.u32 13, %s18
      %p809 = scmp.lt.s32.totalorder %s808, 25
      %s810 = scalar_select %p809, %s808, 25
      %s811 = smul.addr %s810, 8
      %s812 = scalar_lea.vmem %s7, %s811
      // Predicated region
      $region49: #{net_ann_3_no_bn.1} parent=47 // pred_check
        %p813 = pneg %p188
      $region50: #{net_ann_3_no_bn.1} parent=47 // pred_check_branch
        %815 = sbr.rel (%p813) target = $region52
      $region51: #{net_ann_3_no_bn.1} parent=47 // pred_region
        %s816 = smul.u32 13, %s18
      $region52: #{net_ann_3_no_bn.1} parent=47 // pred_fallthru
        _
    $region48: #{net_ann_3_no_bn.1} parent=5 // pred_fallthru
      _
    %p817 = scmp.le.s32.totalorder 2, %s13
    // Predicated region
    $region53: #{net_ann_3_no_bn.1} parent=5 // pred_check
      %p818 = pneg %p817
    $region54: #{net_ann_3_no_bn.1} parent=5 // pred_check_branch
      %820 = sbr.rel (%p818) target = $region56
    $region55: #{net_ann_3_no_bn.1} parent=5 // pred_region
      %s821 = ssub.s32 %s13, 2
      // Predicated region
      $region57: #{net_ann_3_no_bn.1} parent=55 // pred_check
        %p822 = pneg %p194
      $region58: #{net_ann_3_no_bn.1} parent=55 // pred_check_branch
        %824 = sbr.rel (%p822) target = $region60
      $region59: #{net_ann_3_no_bn.1} parent=55 // pred_region
        %s825 = smul.u32 13, %s19
        %p826 = scmp.lt.s32.totalorder %s825, 25
        %s827 = scalar_select %p826, %s825, 25
        %s828 = smul.addr %s827, 8
        %s829 = scalar_lea.vmem %s7, %s828
      $region60: #{net_ann_3_no_bn.1} parent=55 // pred_fallthru
        _
    $region56: #{net_ann_3_no_bn.1} parent=5 // pred_fallthru
      _
  $region6: #{net_ann_3_no_bn.1} parent=0 // loop_footer
    %s17 = sadd.s32 1, %s13
  $region7: #{net_ann_3_no_bn.1} parent=0 // loop_footer_branch
    %12 = sbr.rel target = $region3
  $region8: #{net_ann_3_no_bn.1} parent=0 // loop_exit
    _

</llo_original>
